<compile_context>
chip_gen: v6e
topology: v6e:2x2x1
jax: 0.10.0
libtpu: 0.0.40
codegen_flags: <defaults>
</compile_context>

<pallas_src>
import functools

import jax
import jax.numpy as jnp
from jax.experimental import pallas as pl
from jax.experimental.pallas import tpu as pltpu


# ----------------------------------------------------------------------------
# Pallas kernel: fused MLP forward for the Beta actor.
# ----------------------------------------------------------------------------
def _actor_beta_kernel(x_ref, w1_ref, w2_ref, wh_ref, bias_ref, out_ref,
                       *, hidden, a2, matmul_dtype):
    def to_mm(v):
        # explicit dtype contract: cast only when the MXU operand dtype differs
        return v if v.dtype == matmul_dtype else v.astype(matmul_dtype)

    x = to_mm(x_ref[...])

    # Biases packed as rows of one slab: row0 = b1, row1 = b2, row2 = [ba|bb].
    b1 = bias_ref[0:1, :hidden]
    b2 = bias_ref[1:2, :hidden]
    bh = bias_ref[2:3, :a2]

    # fc1 + tanh (f32 accumulation, f32 activations)
    h1 = jnp.tanh(
        jnp.dot(x, w1_ref[...], preferred_element_type=jnp.float32) + b1)
    # fc2 + tanh
    h2 = jnp.tanh(
        jnp.dot(to_mm(h1), w2_ref[...], preferred_element_type=jnp.float32) + b2)
    # fused alpha|beta head
    z = jnp.dot(to_mm(h2), wh_ref[...], preferred_element_type=jnp.float32) + bh

    # numerically-stable softplus(z) + 1
    res = jnp.maximum(z, 0.0) + jnp.log1p(jnp.exp(-jnp.abs(z))) + 1.0
    out_ref[...] = res if res.dtype == out_ref.dtype else res.astype(out_ref.dtype)


# ----------------------------------------------------------------------------
# One-time parameter packing (hoisted out of the per-call forward path).
# ----------------------------------------------------------------------------
def prepare_actor_beta_params(params, *, matmul_dtype=jnp.bfloat16):
    """Fuse heads, pack biases, cast weights to the MXU operand dtype.

    Returns (w1_m, w2_m, wh_m, bias_pack) — pass this tuple to
    actor_beta_forward().  Do this ONCE (or whenever weights change), not per
    forward call.
    """
    w1, b1, w2, b2, wa, ba, wb, bb = params
    hidden = w1.shape[1]
    action_dim = wa.shape[1]
    a2 = 2 * action_dim

    wh = jnp.concatenate([wa, wb], axis=1)                 # (H, 2A)

    pack_w = max(hidden, a2)
    bias_pack = jnp.zeros((3, pack_w), jnp.float32)
    bias_pack = bias_pack.at[0, :hidden].set(b1.reshape(-1))
    bias_pack = bias_pack.at[1, :hidden].set(b2.reshape(-1))
    bias_pack = bias_pack.at[2, :a2].set(
        jnp.concatenate([ba.reshape(-1), bb.reshape(-1)]))

    def cast(w):
        return w if w.dtype == matmul_dtype else w.astype(matmul_dtype)

    return (cast(w1), cast(w2), cast(wh), bias_pack)


# ----------------------------------------------------------------------------
# Forward wrapper: batch grid + pallas_call.  No padding, no per-call packing.
# ----------------------------------------------------------------------------
def _round_up(x, m):
    return ((x + m - 1) // m) * m


def actor_beta_forward(s, packed_params, *, block_b=8192, out_dtype=jnp.float32):
    """Fused Actor_Beta forward pass as one Pallas kernel. Returns (alpha, beta)."""
    w1_m, w2_m, wh_m, bias_pack = packed_params
    B, in_dim = s.shape
    hidden = w1_m.shape[1]
    a2 = wh_m.shape[1]
    action_dim = a2 // 2
    matmul_dtype = w1_m.dtype

    # ---- batch tiling -------------------------------------------------------
    # * B <= 16: single full-array block (last-two-dims-equal-full rule).
    # * otherwise: multiple-of-16 tile, capped so there are always >= 2 blocks
    #   (lets the "parallel" axis shard across both v7x TensorCores) and by
    #   block_b (step-overhead amortization for big PPO batches).
    if B <= 16:
        tb = B
    else:
        tb = max(16, min(block_b, _round_up((B + 1) // 2, 16)))
    n_blocks = pl.cdiv(B, tb)   # ragged tail handled by Pallas block masking

    const2 = lambda i: (0, 0)   # weights / bias slab stay resident in VMEM
    kernel = functools.partial(_actor_beta_kernel, hidden=hidden, a2=a2,
                               matmul_dtype=matmul_dtype)
    out = pl.pallas_call(
        kernel,
        out_shape=jax.ShapeDtypeStruct((B, a2), out_dtype),
        grid=(n_blocks,),
        in_specs=[
            pl.BlockSpec((tb, in_dim), lambda i: (i, 0)),
            pl.BlockSpec(w1_m.shape, const2),
            pl.BlockSpec(w2_m.shape, const2),
            pl.BlockSpec(wh_m.shape, const2),
            pl.BlockSpec(bias_pack.shape, const2),
        ],
        out_specs=pl.BlockSpec((tb, a2), lambda i: (i, 0)),
        compiler_params=pltpu.CompilerParams(
            dimension_semantics=("parallel",)),
    )(s, w1_m, w2_m, wh_m, bias_pack)

    return out[:, :action_dim], out[:, action_dim:]


# ----------------------------------------------------------------------------
# Deterministic parameter initialization (mirrors orthogonal_init + zero bias).
# ----------------------------------------------------------------------------
def _orthogonal(key, out_dim, in_dim, gain):
    """Orthogonal init of a (out_dim, in_dim) matrix (torch weight layout)."""
    rows, cols = out_dim, in_dim
    a = jax.random.normal(key, (max(rows, cols), min(rows, cols)), jnp.float32)
    q, r = jnp.linalg.qr(a)
    q = q * jnp.sign(jnp.diagonal(r))
    if rows < cols:
        q = q.T
    return gain * q[:rows, :cols]


def init_actor_beta_params(key, state_dim, hidden_width, action_dim):
    in_dim = state_dim + 1
    k1, k2, k3, k4 = jax.random.split(key, 4)
    # torch stores weight as (out, in); transpose to (in, out) for x @ W.
    w1 = _orthogonal(k1, hidden_width, in_dim, gain=0.7).T
    w2 = _orthogonal(k2, hidden_width, hidden_width, gain=0.7).T
    wa = _orthogonal(k3, action_dim, hidden_width, gain=0.01).T
    wb = _orthogonal(k4, action_dim, hidden_width, gain=0.01).T
    b1 = jnp.zeros((1, hidden_width), jnp.float32)
    b2 = jnp.zeros((1, hidden_width), jnp.float32)
    ba = jnp.zeros((1, action_dim), jnp.float32)
    bb = jnp.zeros((1, action_dim), jnp.float32)
    return (w1, b1, w2, b2, wa, ba, wb, bb)


# ----------------------------------------------------------------------------
# Pure-JAX reference for correctness checking.
# ----------------------------------------------------------------------------
def actor_beta_reference(s, params):
    w1, b1, w2, b2, wa, ba, wb, bb = params
    h1 = jnp.tanh(s @ w1 + b1)
    h2 = jnp.tanh(h1 @ w2 + b2)
    alpha = jax.nn.softplus(h2 @ wa + ba) + 1.0
    beta = jax.nn.softplus(h2 @ wb + bb) + 1.0
    return alpha, beta


if __name__ == "__main__":
    # Small, module-consistent shapes.
    batch = 8
    state_dim = 16       # args.state_dim
    hidden_width = 32    # args.hidden_width
    action_dim = 4       # args.action_dim

    key = jax.random.PRNGKey(0)
    k_param, k_in1, k_in2 = jax.random.split(key, 3)

    params = init_actor_beta_params(k_param, state_dim, hidden_width, action_dim)
    s = jax.random.normal(k_in1, (batch, state_dim + 1), jnp.float32)

    # --- f32 MXU path (single block, tight tolerance) -----------------------
    packed_f32 = prepare_actor_beta_params(params, matmul_dtype=jnp.float32)
    alpha, beta = actor_beta_forward(s, packed_f32)
    jax.block_until_ready((alpha, beta))
    alpha_ref, beta_ref = actor_beta_reference(s, params)
    assert alpha.shape == (batch, action_dim) and beta.shape == (batch, action_dim)
    assert jnp.allclose(alpha, alpha_ref, atol=1e-5, rtol=1e-5)
    assert jnp.allclose(beta, beta_ref, atol=1e-5, rtol=1e-5)
    # Beta-distribution parameters must be > 1 by construction.
    assert bool(jnp.all(alpha > 1.0)) and bool(jnp.all(beta > 1.0))

    # --- default bf16-operand path: >= 2 blocks, ragged final block ---------
    # B=20 -> tb=16 -> grid=(2,), second block masked past row 19; no padding.
    packed_bf16 = prepare_actor_beta_params(params)       # default bf16 weights
    s_big = jax.random.normal(k_in2, (20, state_dim + 1), jnp.float32)
    a_big, b_big = actor_beta_forward(s_big, packed_bf16)
    jax.block_until_ready((a_big, b_big))
    a_big_ref, b_big_ref = actor_beta_reference(s_big, params)
    assert a_big.shape == (20, action_dim) and b_big.shape == (20, action_dim)
    assert jnp.allclose(a_big, a_big_ref, atol=2e-2, rtol=2e-2)
    assert jnp.allclose(b_big, b_big_ref, atol=2e-2, rtol=2e-2)
    assert bool(jnp.all(a_big > 1.0)) and bool(jnp.all(b_big > 1.0))

    print("KERNEL_OK")
</pallas_src>

<mosaic_0001>
module attributes {stable_mosaic.version = 11 : i64} {
  func.func @_actor_beta_kernel(%arg0: i32, %arg1: memref<8x17xf32, #tpu.memory_space<vmem>>, %arg2: memref<17x32xf32, #tpu.memory_space<vmem>>, %arg3: memref<32x32xf32, #tpu.memory_space<vmem>>, %arg4: memref<32x8xf32, #tpu.memory_space<vmem>>, %arg5: memref<3x32xf32, #tpu.memory_space<vmem>>, %arg6: memref<8x8xf32, #tpu.memory_space<vmem>>) attributes {dimension_semantics = [#tpu.dimension_semantics<parallel>], iteration_bounds = array<i64: 1>, scalar_prefetch = 0 : i64, scratch_operands = 0 : i64, tpu.core_type = #tpu.core_type<tc>, window_params = [{transform_indices = @transform_0, window_bounds = array<i64: 8, 17>}, {pipeline_mode = #tpu.pipeline_mode<synchronous>, transform_indices = @transform_1, window_bounds = array<i64: 17, 32>}, {pipeline_mode = #tpu.pipeline_mode<synchronous>, transform_indices = @transform_2, window_bounds = array<i64: 32, 32>}, {pipeline_mode = #tpu.pipeline_mode<synchronous>, transform_indices = @transform_3, window_bounds = array<i64: 32, 8>}, {pipeline_mode = #tpu.pipeline_mode<synchronous>, transform_indices = @transform_4, window_bounds = array<i64: 3, 32>}, {transform_indices = @transform_5, window_bounds = array<i64: 8, 8>}]} {
    %c0 = arith.constant 0 : index
    %c0_0 = arith.constant 0 : index
    %0 = vector.load %arg1[%c0, %c0_0] : memref<8x17xf32, #tpu.memory_space<vmem>>, vector<8x17xf32>
    %c0_1 = arith.constant 0 : index
    %c0_2 = arith.constant 0 : index
    %1 = vector.load %arg5[%c0_1, %c0_2] : memref<3x32xf32, #tpu.memory_space<vmem>>, vector<1x32xf32>
    %c1 = arith.constant 1 : index
    %c0_3 = arith.constant 0 : index
    %2 = vector.load %arg5[%c1, %c0_3] : memref<3x32xf32, #tpu.memory_space<vmem>>, vector<1x32xf32>
    %c2 = arith.constant 2 : index
    %c0_4 = arith.constant 0 : index
    %3 = vector.load %arg5[%c2, %c0_4] : memref<3x32xf32, #tpu.memory_space<vmem>>, vector<1x8xf32>
    %c0_5 = arith.constant 0 : index
    %c0_6 = arith.constant 0 : index
    %4 = vector.load %arg2[%c0_5, %c0_6] : memref<17x32xf32, #tpu.memory_space<vmem>>, vector<17x32xf32>
    %cst = arith.constant dense<0.000000e+00> : vector<8x32xf32>
    %5 = tpu.matmul %0, %4, %cst {dimension_numbers = #tpu.dot_dimension_numbers<[1], [0], [0], [1], [0, 0, 1, 1], [], []>} : vector<8x17xf32>, vector<17x32xf32>, vector<8x32xf32> -> vector<8x32xf32>
    %6 = vector.broadcast %1 : vector<1x32xf32> to vector<8x32xf32>
    %7 = arith.addf %5, %6 : vector<8x32xf32>
    %8 = math.tanh %7 : vector<8x32xf32>
    %c0_7 = arith.constant 0 : index
    %c0_8 = arith.constant 0 : index
    %9 = vector.load %arg3[%c0_7, %c0_8] : memref<32x32xf32, #tpu.memory_space<vmem>>, vector<32x32xf32>
    %cst_9 = arith.constant dense<0.000000e+00> : vector<8x32xf32>
    %10 = tpu.matmul %8, %9, %cst_9 {dimension_numbers = #tpu.dot_dimension_numbers<[1], [0], [0], [1], [0, 0, 1, 1], [], []>} : vector<8x32xf32>, vector<32x32xf32>, vector<8x32xf32> -> vector<8x32xf32>
    %11 = vector.broadcast %2 : vector<1x32xf32> to vector<8x32xf32>
    %12 = arith.addf %10, %11 : vector<8x32xf32>
    %13 = math.tanh %12 : vector<8x32xf32>
    %c0_10 = arith.constant 0 : index
    %c0_11 = arith.constant 0 : index
    %14 = vector.load %arg4[%c0_10, %c0_11] : memref<32x8xf32, #tpu.memory_space<vmem>>, vector<32x8xf32>
    %cst_12 = arith.constant dense<0.000000e+00> : vector<8x8xf32>
    %15 = tpu.matmul %13, %14, %cst_12 {dimension_numbers = #tpu.dot_dimension_numbers<[1], [0], [0], [1], [0, 0, 1, 1], [], []>} : vector<8x32xf32>, vector<32x8xf32>, vector<8x8xf32> -> vector<8x8xf32>
    %16 = vector.broadcast %3 : vector<1x8xf32> to vector<8x8xf32>
    %17 = arith.addf %15, %16 : vector<8x8xf32>
    %cst_13 = arith.constant 0.000000e+00 : f32
    %18 = vector.broadcast %cst_13 : f32 to vector<8x8xf32>
    %19 = arith.maximumf %17, %18 : vector<8x8xf32>
    %20 = math.absf %17 : vector<8x8xf32>
    %cst_14 = arith.constant 0.000000e+00 : f32
    %21 = vector.broadcast %cst_14 : f32 to vector<8x8xf32>
    %22 = arith.subf %21, %20 : vector<8x8xf32>
    %23 = math.exp %22 : vector<8x8xf32>
    %24 = math.log1p %23 : vector<8x8xf32>
    %25 = arith.addf %19, %24 : vector<8x8xf32>
    %cst_15 = arith.constant 1.000000e+00 : f32
    %26 = vector.broadcast %cst_15 : f32 to vector<8x8xf32>
    %27 = arith.addf %25, %26 : vector<8x8xf32>
    %c0_16 = arith.constant 0 : index
    %c0_17 = arith.constant 0 : index
    %28 = vector.load %arg6[%c0_16, %c0_17] : memref<8x8xf32, #tpu.memory_space<vmem>>, vector<8x8xf32>
    tpu.vector_store %arg6[%c0_16, %c0_17], %27 {strides = array<i32>} : memref<8x8xf32, #tpu.memory_space<vmem>>, vector<8x8xf32>,
    return
  }
  func.func @transform_0(%arg0: i32) -> (i32, i32) {
    %c0_i32 = arith.constant 0 : i32
    %c0_i32_0 = arith.constant 0 : i32
    return %arg0, %c0_i32 : i32, i32
  }
  func.func @transform_1(%arg0: i32) -> (i32, i32) {
    %c0_i32 = arith.constant 0 : i32
    %c0_i32_0 = arith.constant 0 : i32
    %c0_i32_1 = arith.constant 0 : i32
    return %c0_i32, %c0_i32_0 : i32, i32
  }
  func.func @transform_2(%arg0: i32) -> (i32, i32) {
    %c0_i32 = arith.constant 0 : i32
    %c0_i32_0 = arith.constant 0 : i32
    %c0_i32_1 = arith.constant 0 : i32
    return %c0_i32, %c0_i32_0 : i32, i32
  }
  func.func @transform_3(%arg0: i32) -> (i32, i32) {
    %c0_i32 = arith.constant 0 : i32
    %c0_i32_0 = arith.constant 0 : i32
    %c0_i32_1 = arith.constant 0 : i32
    return %c0_i32, %c0_i32_0 : i32, i32
  }
  func.func @transform_4(%arg0: i32) -> (i32, i32) {
    %c0_i32 = arith.constant 0 : i32
    %c0_i32_0 = arith.constant 0 : i32
    %c0_i32_1 = arith.constant 0 : i32
    return %c0_i32, %c0_i32_0 : i32, i32
  }
  func.func @transform_5(%arg0: i32) -> (i32, i32) {
    %c0_i32 = arith.constant 0 : i32
    %c0_i32_0 = arith.constant 0 : i32
    return %arg0, %c0_i32 : i32, i32
  }
}

</mosaic_0001>

<llo_original>
// kernel: tpu_custom_call.1
$region0: #{tpu_custom_call.1}
  #allocation0 [shape = 'u32[]', space=smem, size = 0x4, offset = 0x4, fixed_abs, tag = 'smem constant byte address 0x4 - core index']
  #allocation1 [shape = 'u32[144,128]{1,0:T(1,128)}', space=vmem, size = 0x12000, scoped, tag = 'internal scratch']
  %s0 = inlined_call_operand.vmem [shape: f32[8,17], index: 0, kind: input, shape index: {}]
  %s1 = inlined_call_operand.hbm [shape: f32[17,32], index: 1, kind: input, shape index: {}]
  %s2 = inlined_call_operand.vmem [shape: f32[32,32], index: 2, kind: input, shape index: {}]
  %s3 = inlined_call_operand.vmem [shape: f32[32,8], index: 3, kind: input, shape index: {}]
  %s4 = inlined_call_operand.vmem [shape: f32[3,32], index: 4, kind: input, shape index: {}]
  %s5 = inlined_call_operand.hbm [shape: f32[8,8], index: 5, kind: output, shape index: {}]
  %s6 = sld [smem:[#allocation0]]
  $region34: #{tpu_custom_call.1} parent=0
    _
  %s8 = ssub.s32 1, %s6
  %s9 = scalar_select 0, %s8, %s6
  $region1: #{tpu_custom_call.1} parent=0
    #allocation2 [shape = 'u8[12288]{0}', space=vmem, size = 0x3000, scoped, tag = 'input window, operand 1, single buffered']
    #allocation3 [shape = 's32[1]{0}', space=sflag, size = 0x4, scoped, tag = 'scoped memory for tpu_custom_call.1']
    #allocation4 [shape = 's32[1]{0}', space=sflag, size = 0x4, scoped, tag = 'scoped memory for tpu_custom_call.1']
    #allocation5 [shape = 'u8[4096]{0}', space=vmem, size = 0x1000, scoped, tag = 'output window, operand 0, single buffered']
    %10 = vsyncpa [#allocation3], 0
    %11 = vsyncpa [#allocation4], 0
    // Predicated region
    $region2: #{tpu_custom_call.1} parent=1 // pred_check
      _
    $region3: #{tpu_custom_call.1} parent=1 // pred_check_branch
      %13 = sbr.rel (0) target = $region5
    $region4: #{tpu_custom_call.1} parent=1 // pred_region
      _
    $region5: #{tpu_custom_call.1} parent=1 // pred_fallthru
      _
    // Predicated region
    $region6: #{tpu_custom_call.1} parent=1 // pred_check
      _
    $region7: #{tpu_custom_call.1} parent=1 // pred_check_branch
      %15 = sbr.rel (0) target = $region9
    $region8: #{tpu_custom_call.1} parent=1 // pred_region
      %s17 = ssub.s32 384, 384
      %18 = vsyncadd [#allocation3], %s17
      %s19 = sshll.u32 [#allocation2], 4
      %s20 = int_to_ptr.vmem [resolvable:$true] %s19
      %25 = dma.hbm_to_vmem [thread:$0]  %s1, 384, %s20, [#allocation3], 128, 128, 8
    $region9: #{tpu_custom_call.1} parent=1 // pred_fallthru
      _
    // Predicated region
    $region10: #{tpu_custom_call.1} parent=1 // pred_check
      _
    $region11: #{tpu_custom_call.1} parent=1 // pred_check_branch
      %27 = sbr.rel (0) target = $region13
    $region12: #{tpu_custom_call.1} parent=1 // pred_region
      _
    $region13: #{tpu_custom_call.1} parent=1 // pred_fallthru
      _
    // Predicated region
    $region14: #{tpu_custom_call.1} parent=1 // pred_check
      _
    $region15: #{tpu_custom_call.1} parent=1 // pred_check_branch
      %29 = sbr.rel (0) target = $region17
    $region16: #{tpu_custom_call.1} parent=1 // pred_region
      _
    $region17: #{tpu_custom_call.1} parent=1 // pred_fallthru
      _
    // Predicated region
    $region18: #{tpu_custom_call.1} parent=1 // pred_check
      _
    $region19: #{tpu_custom_call.1} parent=1 // pred_check_branch
      %31 = sbr.rel (0) target = $region21
    $region20: #{tpu_custom_call.1} parent=1 // pred_region
      _
    $region21: #{tpu_custom_call.1} parent=1 // pred_fallthru
      _
    // Predicated region
    $region22: #{tpu_custom_call.1} parent=1 // pred_check
      _
    $region23: #{tpu_custom_call.1} parent=1 // pred_check_branch
      %33 = sbr.rel (0) target = $region25
    $region24: #{tpu_custom_call.1} parent=1 // pred_region
      %34 = dma.done [#allocation3], 384
    $region25: #{tpu_custom_call.1} parent=1 // pred_fallthru
      _
    %v35 = vld [vmem:[%s0] sm:$0xff]
    %v36 = vld [vmem:[%s4] sm:$0x1]
    %v37 = vld [vmem:[%s4 + $0x1] sm:$0x1]
    %v38 = vld [vmem:[%s4 + $0x2] sm:$0x1]
    %v39 = vld [vmem:[#allocation2] sm:$0xff]
    %v40 = vld [vmem:[#allocation2 + $0x8] sm:$0xff]
    %v41 = vld [vmem:[#allocation2 + $0x10] sm:$0x1]
    %v42 = vlaneseq
    %v43 = vshrl.u32 %v42, 7
    %v44 = vsub.s32 0, %v43
    %v45 = vrot.slane %v36, %v44
    %vm46 = vcmask 138240
    %v48 = vsel %vm46, %v35, 0
    %vm50 = vcmask 1040384
    %v52 = vsel %vm50, %v41, 0
    %54 = vmatprep.subr.mxu0 0.0
    %55 = vmatpush1.msra.mxu0 0.0
    %56 = vmatprep.subr.mxu0 0.0
    %57 = vmatpush1.msra.mxu0 0.0
    %58 = vmatprep.subr.mxu0 0.0
    %59 = vmatpush1.msra.mxu0 0.0
    %60 = vmatprep.subr.mxu0 0.0
    %61 = vmatpush1.msra.mxu0 0.0
    %62 = vmatprep.subr.mxu0 0.0
    %63 = vmatpush1.msra.mxu0 0.0
    %64 = vmatprep.subr.mxu0 0.0
    %65 = vmatpush1.msra.mxu0 0.0
    %66 = vmatprep.subr.mxu0 0.0
    %67 = vmatpush1.msra.mxu0 0.0
    %68 = vmatprep.subr.mxu0 0.0
    %69 = vmatpush1.msra.mxu0 0.0
    %70 = vmatprep.subr.mxu0 0.0
    %71 = vmatpush1.msra.mxu0 0.0
    %72 = vmatprep.subr.mxu0 0.0
    %73 = vmatpush1.msra.mxu0 0.0
    %74 = vmatprep.subr.mxu0 0.0
    %75 = vmatpush1.msra.mxu0 0.0
    %76 = vmatprep.subr.mxu0 0.0
    %77 = vmatpush1.msra.mxu0 0.0
    %78 = vmatprep.subr.mxu0 0.0
    %79 = vmatpush1.msra.mxu0 0.0
    %80 = vmatprep.subr.mxu0 0.0
    %81 = vmatpush1.msra.mxu0 %v52
    %82 = vmatprep.subr.mxu0 0.0
    %83 = vmatpush1.msra.mxu0 %v40
    %84 = vmatprep.subr.mxu0 0.0
    %85 = vmatpush1.msra.mxu0 %v39
    %86 = vmatprep.subr.mxu0 0.0
    %87 = vmatpush2.msra.mxu0 0.0
    %88 = vmatprep.subr.mxu0 0.0
    %89 = vmatpush2.msra.mxu0 0.0
    %90 = vmatprep.subr.mxu0 0.0
    %91 = vmatpush2.msra.mxu0 0.0
    %92 = vmatprep.subr.mxu0 0.0
    %93 = vmatpush2.msra.mxu0 0.0
    %94 = vmatprep.subr.mxu0 0.0
    %95 = vmatpush2.msra.mxu0 0.0
    %96 = vmatprep.subr.mxu0 0.0
    %97 = vmatpush2.msra.mxu0 0.0
    %98 = vmatprep.subr.mxu0 0.0
    %99 = vmatpush2.msra.mxu0 0.0
    %100 = vmatprep.subr.mxu0 0.0
    %101 = vmatpush2.msra.mxu0 0.0
    %102 = vmatprep.subr.mxu0 0.0
    %103 = vmatpush2.msra.mxu0 0.0
    %104 = vmatprep.subr.mxu0 0.0
    %105 = vmatpush2.msra.mxu0 0.0
    %106 = vmatprep.subr.mxu0 0.0
    %107 = vmatpush2.msra.mxu0 0.0
    %108 = vmatprep.subr.mxu0 0.0
    %109 = vmatpush2.msra.mxu0 0.0
    %110 = vmatprep.subr.mxu0 0.0
    %111 = vmatpush2.msra.mxu0 0.0
    %112 = vmatprep.subr.mxu0 0.0
    %113 = vmatpush2.msra.mxu0 0.0
    %114 = vmatprep.subr.mxu0 0.0
    %115 = vmatpush2.msra.mxu0 0.0
    %116 = vmatprep.subr.mxu0 0.0
    %117 = vmatpush2.msra.mxu0 0.0
    %118 = vmatprep.mubr.f32.mxu0 0.0
    %119 = vmatmul.mubr.f32.gmra.mxu0 %v48
    %v120 = vpop.f32.mrf.mxu0
    %v121 = vadd.f32 %v45, %v120
    %v122 = vpop.f32.mrf.mxu0
    %123 = vdwg.mxu0
    %v124 = vtanh.pop %v121
    %v125 = vld [vmem:[%s2] sm:$0xff]
    %v126 = vld [vmem:[%s2 + $0x8] sm:$0xff]
    %v127 = vld [vmem:[%s2 + $0x10] sm:$0xff]
    %v128 = vld [vmem:[%s2 + $0x18] sm:$0xff]
    %v129 = vlaneseq
    %v130 = vshrl.u32 %v129, 7
    %v131 = vsub.s32 0, %v130
    %v132 = vrot.slane %v37, %v131
    %vm133 = vcmask 261120
    %v135 = vsel %vm133, %v124, 0
    %137 = vmatprep.subr.mxu0 0.0
    %138 = vmatpush1.msra.mxu0 0.0
    %139 = vmatprep.subr.mxu0 0.0
    %140 = vmatpush1.msra.mxu0 0.0
    %141 = vmatprep.subr.mxu0 0.0
    %142 = vmatpush1.msra.mxu0 0.0
    %143 = vmatprep.subr.mxu0 0.0
    %144 = vmatpush1.msra.mxu0 0.0
    %145 = vmatprep.subr.mxu0 0.0
    %146 = vmatpush1.msra.mxu0 0.0
    %147 = vmatprep.subr.mxu0 0.0
    %148 = vmatpush1.msra.mxu0 0.0
    %149 = vmatprep.subr.mxu0 0.0
    %150 = vmatpush1.msra.mxu0 0.0
    %151 = vmatprep.subr.mxu0 0.0
    %152 = vmatpush1.msra.mxu0 0.0
    %153 = vmatprep.subr.mxu0 0.0
    %154 = vmatpush1.msra.mxu0 0.0
    %155 = vmatprep.subr.mxu0 0.0
    %156 = vmatpush1.msra.mxu0 0.0
    %157 = vmatprep.subr.mxu0 0.0
    %158 = vmatpush1.msra.mxu0 0.0
    %159 = vmatprep.subr.mxu0 0.0
    %160 = vmatpush1.msra.mxu0 0.0
    %161 = vmatprep.subr.mxu0 0.0
    %162 = vmatpush1.msra.mxu0 %v128
    %163 = vmatprep.subr.mxu0 0.0
    %164 = vmatpush1.msra.mxu0 %v127
    %165 = vmatprep.subr.mxu0 0.0
    %166 = vmatpush1.msra.mxu0 %v126
    %167 = vmatprep.subr.mxu0 0.0
    %168 = vmatpush1.msra.mxu0 %v125
    %169 = vmatprep.subr.mxu0 0.0
    %170 = vmatpush2.msra.mxu0 0.0
    %171 = vmatprep.subr.mxu0 0.0
    %172 = vmatpush2.msra.mxu0 0.0
    %173 = vmatprep.subr.mxu0 0.0
    %174 = vmatpush2.msra.mxu0 0.0
    %175 = vmatprep.subr.mxu0 0.0
    %176 = vmatpush2.msra.mxu0 0.0
    %177 = vmatprep.subr.mxu0 0.0
    %178 = vmatpush2.msra.mxu0 0.0
    %179 = vmatprep.subr.mxu0 0.0
    %180 = vmatpush2.msra.mxu0 0.0
    %181 = vmatprep.subr.mxu0 0.0
    %182 = vmatpush2.msra.mxu0 0.0
    %183 = vmatprep.subr.mxu0 0.0
    %184 = vmatpush2.msra.mxu0 0.0
    %185 = vmatprep.subr.mxu0 0.0
    %186 = vmatpush2.msra.mxu0 0.0
    %187 = vmatprep.subr.mxu0 0.0
    %188 = vmatpush2.msra.mxu0 0.0
    %189 = vmatprep.subr.mxu0 0.0
    %190 = vmatpush2.msra.mxu0 0.0
    %191 = vmatprep.subr.mxu0 0.0
    %192 = vmatpush2.msra.mxu0 0.0
    %193 = vmatprep.subr.mxu0 0.0
    %194 = vmatpush2.msra.mxu0 0.0
    %195 = vmatprep.subr.mxu0 0.0
    %196 = vmatpush2.msra.mxu0 0.0
    %197 = vmatprep.subr.mxu0 0.0
    %198 = vmatpush2.msra.mxu0 0.0
    %199 = vmatprep.subr.mxu0 0.0
    %200 = vmatpush2.msra.mxu0 0.0
    %201 = vmatprep.mubr.f32.mxu0 0.0
    %202 = vmatmul.mubr.f32.gmra.mxu0 %v135
    %v203 = vpop.f32.mrf.mxu0
    %v204 = vadd.f32 %v132, %v203
    %v205 = vpop.f32.mrf.mxu0
    %206 = vdwg.mxu0
    %v207 = vtanh.pop %v204
    %v208 = vld [vmem:[%s3] sm:$0xff]
    %v209 = vld [vmem:[%s3 + $0x8] sm:$0xff]
    %v210 = vld [vmem:[%s3 + $0x10] sm:$0xff]
    %v211 = vld [vmem:[%s3 + $0x18] sm:$0xff]
    %v212 = vlaneseq
    %v213 = vshrl.u32 %v212, 7
    %v214 = vsub.s32 0, %v213
    %v215 = vrot.slane %v38, %v214
    %v217 = vsel %vm133, %v207, 0
    %219 = vmatprep.subr.mxu0 0.0
    %220 = vmatpush1.msra.mxu0 0.0
    %221 = vmatprep.subr.mxu0 0.0
    %222 = vmatpush1.msra.mxu0 0.0
    %223 = vmatprep.subr.mxu0 0.0
    %224 = vmatpush1.msra.mxu0 0.0
    %225 = vmatprep.subr.mxu0 0.0
    %226 = vmatpush1.msra.mxu0 0.0
    %227 = vmatprep.subr.mxu0 0.0
    %228 = vmatpush1.msra.mxu0 0.0
    %229 = vmatprep.subr.mxu0 0.0
    %230 = vmatpush1.msra.mxu0 0.0
    %231 = vmatprep.subr.mxu0 0.0
    %232 = vmatpush1.msra.mxu0 0.0
    %233 = vmatprep.subr.mxu0 0.0
    %234 = vmatpush1.msra.mxu0 0.0
    %235 = vmatprep.subr.mxu0 0.0
    %236 = vmatpush1.msra.mxu0 0.0
    %237 = vmatprep.subr.mxu0 0.0
    %238 = vmatpush1.msra.mxu0 0.0
    %239 = vmatprep.subr.mxu0 0.0
    %240 = vmatpush1.msra.mxu0 0.0
    %241 = vmatprep.subr.mxu0 0.0
    %242 = vmatpush1.msra.mxu0 0.0
    %243 = vmatprep.subr.mxu0 0.0
    %244 = vmatpush1.msra.mxu0 %v211
    %245 = vmatprep.subr.mxu0 0.0
    %246 = vmatpush1.msra.mxu0 %v210
    %247 = vmatprep.subr.mxu0 0.0
    %248 = vmatpush1.msra.mxu0 %v209
    %249 = vmatprep.subr.mxu0 0.0
    %250 = vmatpush1.msra.mxu0 %v208
    %251 = vmatprep.subr.mxu0 0.0
    %252 = vmatpush2.msra.mxu0 0.0
    %253 = vmatprep.subr.mxu0 0.0
    %254 = vmatpush2.msra.mxu0 0.0
    %255 = vmatprep.subr.mxu0 0.0
    %256 = vmatpush2.msra.mxu0 0.0
    %257 = vmatprep.subr.mxu0 0.0
    %258 = vmatpush2.msra.mxu0 0.0
    %259 = vmatprep.subr.mxu0 0.0
    %260 = vmatpush2.msra.mxu0 0.0
    %261 = vmatprep.subr.mxu0 0.0
    %262 = vmatpush2.msra.mxu0 0.0
    %263 = vmatprep.subr.mxu0 0.0
    %264 = vmatpush2.msra.mxu0 0.0
    %265 = vmatprep.subr.mxu0 0.0
    %266 = vmatpush2.msra.mxu0 0.0
    %267 = vmatprep.subr.mxu0 0.0
    %268 = vmatpush2.msra.mxu0 0.0
    %269 = vmatprep.subr.mxu0 0.0
    %270 = vmatpush2.msra.mxu0 0.0
    %271 = vmatprep.subr.mxu0 0.0
    %272 = vmatpush2.msra.mxu0 0.0
    %273 = vmatprep.subr.mxu0 0.0
    %274 = vmatpush2.msra.mxu0 0.0
    %275 = vmatprep.subr.mxu0 0.0
    %276 = vmatpush2.msra.mxu0 0.0
    %277 = vmatprep.subr.mxu0 0.0
    %278 = vmatpush2.msra.mxu0 0.0
    %279 = vmatprep.subr.mxu0 0.0
    %280 = vmatpush2.msra.mxu0 0.0
    %281 = vmatprep.subr.mxu0 0.0
    %282 = vmatpush2.msra.mxu0 0.0
    %283 = vmatprep.mubr.f32.mxu0 0.0
    %284 = vmatmul.mubr.f32.gmra.mxu0 %v217
    %v285 = vpop.f32.mrf.mxu0
    %v286 = vadd.f32 %v215, %v285
    %v287 = vpop.f32.mrf.mxu0
    %288 = vdwg.mxu0
    %v289 = vmax.f32 %v286, 0.0
    %v290 = vand.u32 2147483647, %v286
    %v291 = vsub.f32 0.0, %v290
    %v292 = vmul.f32 %v291, 1.442695
    %v293 = vpow.pop %v292
    %v294 = vadd.f32 %v293, 1.0
    %v295 = vlog2.pop %v294
    %v296 = vmul.f32 %v295, 0.6931472
    %v297 = vmul.f32 -0.5, %v293
    %v298 = vadd.f32 %v297, 1.0
    %v299 = vmul.f32 %v298, %v293
    %v300 = vand.u32 2147483647, %v293
    %vm301 = vcmp.lt.f32.partialorder %v300, 0.0004427343
    %v302 = vsel %vm301, %v299, %v296
    %v303 = vadd.f32 %v289, %v302
    %v304 = vadd.f32 %v303, 1.0
    %vm305 = vcmask 64512
    %306 = vst.msk [vmem:[#allocation5] sm:$0xff] %vm305, %v304
    // Predicated region
    $region26: #{tpu_custom_call.1} parent=1 // pred_check
      _
    $region27: #{tpu_custom_call.1} parent=1 // pred_check_branch
      %308 = sbr.rel (0) target = $region29
    $region28: #{tpu_custom_call.1} parent=1 // pred_region
      %s310 = ssub.s32 128, 128
      %311 = vsyncadd [#allocation4], %s310
      %s313 = sshll.u32 [#allocation5], 4
      %s314 = int_to_ptr.vmem [resolvable:$true] %s313
      %316 = dma.vmem_to_hbm [thread:$0]  %s314, 128, %s5, [#allocation4]
    $region29: #{tpu_custom_call.1} parent=1 // pred_fallthru
      _
    // Predicated region
    $region30: #{tpu_custom_call.1} parent=1 // pred_check
      _
    $region31: #{tpu_custom_call.1} parent=1 // pred_check_branch
      %318 = sbr.rel (0) target = $region33
    $region32: #{tpu_custom_call.1} parent=1 // pred_region
      %319 = dma.done [#allocation4], 128
    $region33: #{tpu_custom_call.1} parent=1 // pred_fallthru
      _
    %320 = vsyncpa [#allocation3], 1
    %321 = vsyncpa [#allocation4], 1

</llo_original>
